<compile_context>
chip_gen: v6e
topology: v6e:2x2x1
jax: 0.10.0
libtpu: 0.0.40
codegen_flags: <defaults>
</compile_context>

<pallas_src>
import functools

import numpy as np
import jax
import jax.numpy as jnp
from jax.experimental import pallas as pl
from jax.experimental.pallas import tpu as pltpu

_LANE = 128
_MAX_WIDTH = 1024                 # widest lane-dense slab we try for
_BLOCK_ELEMS = 512 * 1024         # per-operand tile cap (~2 MiB at f32)
_VMEM_LIMIT = 32 * 1024 * 1024    # raise scoped-VMEM limit (<= physical on all gens)


# ---------------------------------------------------------------- kernels ---
def _eq_pair_kernel(x_ref, y_ref, o0_ref, o1_ref):
    x = x_ref[...]
    y = y_ref[...]
    o0_ref[...] = (x == y).astype(o0_ref.dtype)   # torch.eq(x, y)
    o1_ref[...] = (y == y).astype(o1_ref.dtype)   # torch.eq(y, y) (NaN-correct)


def _eq_scalar_kernel(z_ref, o2_ref):
    o2_ref[...] = (z_ref[...] == 3).astype(o2_ref.dtype)   # torch.eq(z, 3)


# ----------------------------------------------------------- shape helpers --
def _lane_dense_2d(a):
    """Flatten to a lane-dense (rows, width) slab with width a multiple of 128.

    Sizes not divisible by 128 are zero-padded; the caller slices the result
    back to the original element count.
    """
    n = a.size
    flat = a.reshape(-1)
    width = _MAX_WIDTH
    while width >= _LANE:
        if n % width == 0:
            return flat.reshape(n // width, width)
        width //= 2
    padded = pl.cdiv(n, _LANE) * _LANE
    flat = jnp.pad(flat, (0, padded - n))
    return flat.reshape(padded // _LANE, _LANE)


def _block_rows(rows, width):
    """Row tile: multiple of 32 (dense packed bool/i8 stores), capped at
    _BLOCK_ELEMS elements per operand, and small enough that large inputs
    get >= 2 grid steps (second TensorCore on v7x)."""
    if rows < 64:
        return rows                                   # full-extent block (allowed)
    cap = max(32, (_BLOCK_ELEMS // width) // 32 * 32)
    half = max(32, (rows // 2) // 32 * 32)            # >= 2 grid steps
    return min(half, cap)


def _compiler_params():
    return pltpu.CompilerParams(
        dimension_semantics=("parallel",),
        vmem_limit_bytes=_VMEM_LIMIT,
    )


# ------------------------------------------------------------ pallas calls --
def _eq_pair_call(x2, y2, out_dtype):
    rows, width = x2.shape
    br = _block_rows(rows, width)
    spec = pl.BlockSpec((br, width), lambda i: (i, 0))
    n = rows * width
    out_bytes = np.dtype(out_dtype).itemsize
    cost = pl.CostEstimate(
        flops=2 * n,
        transcendentals=0,
        bytes_accessed=n * (x2.dtype.itemsize + y2.dtype.itemsize + 2 * out_bytes),
    )
    return pl.pallas_call(
        _eq_pair_kernel,
        out_shape=(jax.ShapeDtypeStruct((rows, width), out_dtype),
                   jax.ShapeDtypeStruct((rows, width), out_dtype)),
        grid=(pl.cdiv(rows, br),),
        in_specs=[spec, spec],
        out_specs=(spec, spec),
        compiler_params=_compiler_params(),
        cost_estimate=cost,
    )(x2, y2)


def _eq_scalar_call(z2, out_dtype):
    rows, width = z2.shape
    br = _block_rows(rows, width)
    spec = pl.BlockSpec((br, width), lambda i: (i, 0))
    n = rows * width
    out_bytes = np.dtype(out_dtype).itemsize
    cost = pl.CostEstimate(
        flops=n,
        transcendentals=0,
        bytes_accessed=n * (z2.dtype.itemsize + out_bytes),
    )
    return pl.pallas_call(
        _eq_scalar_kernel,
        out_shape=jax.ShapeDtypeStruct((rows, width), out_dtype),
        grid=(pl.cdiv(rows, br),),
        in_specs=[spec],
        out_specs=spec,
        compiler_params=_compiler_params(),
        cost_estimate=cost,
    )(z2)


# ----------------------------------------------------- bool capability probe --
@functools.lru_cache(maxsize=1)
def _bool_refs_supported():
    """Probe once whether Mosaic accepts bool-typed output refs."""
    def probe(x_ref, o_ref):
        o_ref[...] = (x_ref[...] == 0).astype(o_ref.dtype)

    try:
        out = pl.pallas_call(
            probe,
            out_shape=jax.ShapeDtypeStruct((8, _LANE), jnp.bool_),
        )(jnp.zeros((8, _LANE), jnp.float32))
        jax.block_until_ready(out)
        return True
    except Exception:
        # Old Mosaic lowering without bool refs: fall back to int8 + one cast.
        return False


# ---------------------------------------------------------------- forward ---
@functools.partial(jax.jit, static_argnames=("out_dtype",))
def _forward_impl(x, y, z, out_dtype):
    x2 = _lane_dense_2d(x)
    y2 = _lane_dense_2d(y)
    z2 = _lane_dense_2d(z)

    o0, o1 = _eq_pair_call(x2, y2, out_dtype)
    o2 = _eq_scalar_call(z2, out_dtype)

    def unflatten(o, orig):
        flat = o.reshape(-1)[: orig.size]          # drops pad (no-op if none)
        return flat.reshape(orig.shape).astype(jnp.bool_)   # no-op on bool path

    return unflatten(o0, x), unflatten(o1, y), unflatten(o2, z)


def model_forward(x, y, z):
    """JAX equivalent of Model.forward. Returns three boolean arrays."""
    # TODO(synk): torch.eq broadcasting between differently-shaped x and y is
    # not implemented; same-shape x/y (as in the pnnx test) is assumed.
    if x.shape != y.shape:
        raise NotImplementedError("model_forward requires x.shape == y.shape")
    out_dtype = jnp.bool_ if _bool_refs_supported() else jnp.int8
    return _forward_impl(x, y, z, out_dtype)


if __name__ == "__main__":
    key = jax.random.PRNGKey(0)
    kx, ky, kz = jax.random.split(key, 3)

    # Small shapes consistent with the elementwise forward (x/y same shape).
    x = jax.random.randint(kx, (8, 128), 0, 4).astype(jnp.float32)
    y = jax.random.randint(ky, (8, 128), 0, 4).astype(jnp.float32)
    z = jax.random.randint(kz, (4, 8, 128), 0, 6, dtype=jnp.int32)

    out0, out1, out2 = model_forward(x, y, z)
    jax.block_until_ready((out0, out1, out2))

    assert out0.dtype == jnp.bool_ and out1.dtype == jnp.bool_ and out2.dtype == jnp.bool_
    assert out0.shape == x.shape and out1.shape == y.shape and out2.shape == z.shape
    assert bool(jnp.all(out0 == (x == y)))
    assert bool(jnp.all(out1 == (y == y)))
    assert bool(jnp.all(out2 == (z == 3)))

    # Exercise the pad-and-slice path (element counts not multiples of 128).
    xs = jax.random.randint(kx, (5, 7), 0, 3).astype(jnp.float32)
    ys = jax.random.randint(ky, (5, 7), 0, 3).astype(jnp.float32)
    zs = jax.random.randint(kz, (3, 11), 0, 6, dtype=jnp.int32)
    s0, s1, s2 = model_forward(xs, ys, zs)
    jax.block_until_ready((s0, s1, s2))
    assert bool(jnp.all(s0 == (xs == ys)))
    assert bool(jnp.all(s1 == (ys == ys)))
    assert bool(jnp.all(s2 == (zs == 3)))

    print("KERNEL_OK")
</pallas_src>

<mosaic_0001>
module attributes {stable_mosaic.version = 11 : i64} {
  func.func @probe(%arg0: memref<8x128xf32, #tpu.memory_space<vmem>>, %arg1: memref<8x128xi32, #tpu.memory_space<vmem>>) attributes {dimension_semantics = [], scalar_prefetch = 0 : i64, scratch_operands = 0 : i64, tpu.core_type = #tpu.core_type<tc>} {
    %c0 = arith.constant 0 : index
    %c0_0 = arith.constant 0 : index
    %0 = vector.load %arg0[%c0, %c0_0] : memref<8x128xf32, #tpu.memory_space<vmem>>, vector<8x128xf32>
    %cst = arith.constant 0.000000e+00 : f32
    %1 = vector.broadcast %cst : f32 to vector<8x128xf32>
    %2 = arith.cmpf oeq, %0, %1 : vector<8x128xf32>
    %c0_1 = arith.constant 0 : index
    %c0_2 = arith.constant 0 : index
    %3 = vector.load %arg1[%c0_1, %c0_2] : memref<8x128xi32, #tpu.memory_space<vmem>>, vector<8x128xi32>
    %4 = arith.extui %2 : vector<8x128xi1> to vector<8x128xi32>
    %cst_3 = arith.constant dense<0> : vector<8x128xi32>
    %5 = arith.cmpi ne, %3, %cst_3 : vector<8x128xi32>
    tpu.vector_store %arg1[%c0_1, %c0_2], %4 {strides = array<i32>} : memref<8x128xi32, #tpu.memory_space<vmem>>, vector<8x128xi32>,
    return
  }
}

module attributes {stable_mosaic.version = 11 : i64} {
  func.func @_eq_scalar_kernel(%arg0: i32, %arg1: memref<4x1024xi32, #tpu.memory_space<vmem>>, %arg2: memref<4x1024xi8, #tpu.memory_space<vmem>>) attributes {dimension_semantics = [#tpu.dimension_semantics<parallel>], iteration_bounds = array<i64: 1>, scalar_prefetch = 0 : i64, scratch_operands = 0 : i64, tpu.core_type = #tpu.core_type<tc>, window_params = [{transform_indices = @transform_0, window_bounds = array<i64: 4, 1024>}, {transform_indices = @transform_1, window_bounds = array<i64: 4, 1024>}]} {
    %c0 = arith.constant 0 : index
    %c0_0 = arith.constant 0 : index
    %0 = vector.load %arg1[%c0, %c0_0] : memref<4x1024xi32, #tpu.memory_space<vmem>>, vector<4x1024xi32>
    %c3_i32 = arith.constant 3 : i32
    %1 = vector.broadcast %c3_i32 : i32 to vector<4x1024xi32>
    %2 = arith.cmpi eq, %0, %1 : vector<4x1024xi32>
    %3 = arith.extui %2 : vector<4x1024xi1> to vector<4x1024xi8>
    %c0_1 = arith.constant 0 : index
    %c0_2 = arith.constant 0 : index
    %4 = vector.load %arg2[%c0_1, %c0_2] : memref<4x1024xi8, #tpu.memory_space<vmem>>, vector<4x1024xi8>
    tpu.vector_store %arg2[%c0_1, %c0_2], %3 {strides = array<i32>} : memref<4x1024xi8, #tpu.memory_space<vmem>>, vector<4x1024xi8>,
    return
  }
  func.func @transform_0(%arg0: i32) -> (i32, i32) {
    %c0_i32 = arith.constant 0 : i32
    %c0_i32_0 = arith.constant 0 : i32
    return %arg0, %c0_i32 : i32, i32
  }
  func.func @transform_1(%arg0: i32) -> (i32, i32) {
    %c0_i32 = arith.constant 0 : i32
    %c0_i32_0 = arith.constant 0 : i32
    return %arg0, %c0_i32 : i32, i32
  }
}

module attributes {stable_mosaic.version = 11 : i64} {
  func.func @_eq_pair_kernel(%arg0: i32, %arg1: memref<1x1024xf32, #tpu.memory_space<vmem>>, %arg2: memref<1x1024xf32, #tpu.memory_space<vmem>>, %arg3: memref<1x1024xi8, #tpu.memory_space<vmem>>, %arg4: memref<1x1024xi8, #tpu.memory_space<vmem>>) attributes {dimension_semantics = [#tpu.dimension_semantics<parallel>], iteration_bounds = array<i64: 1>, scalar_prefetch = 0 : i64, scratch_operands = 0 : i64, tpu.core_type = #tpu.core_type<tc>, window_params = [{transform_indices = @transform_0, window_bounds = array<i64: 1, 1024>}, {transform_indices = @transform_1, window_bounds = array<i64: 1, 1024>}, {transform_indices = @transform_2, window_bounds = array<i64: 1, 1024>}, {transform_indices = @transform_3, window_bounds = array<i64: 1, 1024>}]} {
    %c0 = arith.constant 0 : index
    %c0_0 = arith.constant 0 : index
    %0 = vector.load %arg1[%c0, %c0_0] : memref<1x1024xf32, #tpu.memory_space<vmem>>, vector<1x1024xf32>
    %c0_1 = arith.constant 0 : index
    %c0_2 = arith.constant 0 : index
    %1 = vector.load %arg2[%c0_1, %c0_2] : memref<1x1024xf32, #tpu.memory_space<vmem>>, vector<1x1024xf32>
    %2 = arith.cmpf oeq, %0, %1 : vector<1x1024xf32>
    %3 = arith.extui %2 : vector<1x1024xi1> to vector<1x1024xi8>
    %c0_3 = arith.constant 0 : index
    %c0_4 = arith.constant 0 : index
    %4 = vector.load %arg3[%c0_3, %c0_4] : memref<1x1024xi8, #tpu.memory_space<vmem>>, vector<1x1024xi8>
    tpu.vector_store %arg3[%c0_3, %c0_4], %3 {strides = array<i32>} : memref<1x1024xi8, #tpu.memory_space<vmem>>, vector<1x1024xi8>,
    %5 = arith.cmpf oeq, %1, %1 : vector<1x1024xf32>
    %6 = arith.extui %5 : vector<1x1024xi1> to vector<1x1024xi8>
    %c0_5 = arith.constant 0 : index
    %c0_6 = arith.constant 0 : index
    %7 = vector.load %arg4[%c0_5, %c0_6] : memref<1x1024xi8, #tpu.memory_space<vmem>>, vector<1x1024xi8>
    tpu.vector_store %arg4[%c0_5, %c0_6], %6 {strides = array<i32>} : memref<1x1024xi8, #tpu.memory_space<vmem>>, vector<1x1024xi8>,
    return
  }
  func.func @transform_0(%arg0: i32) -> (i32, i32) {
    %c0_i32 = arith.constant 0 : i32
    %c0_i32_0 = arith.constant 0 : i32
    return %arg0, %c0_i32 : i32, i32
  }
  func.func @transform_1(%arg0: i32) -> (i32, i32) {
    %c0_i32 = arith.constant 0 : i32
    %c0_i32_0 = arith.constant 0 : i32
    return %arg0, %c0_i32 : i32, i32
  }
  func.func @transform_2(%arg0: i32) -> (i32, i32) {
    %c0_i32 = arith.constant 0 : i32
    %c0_i32_0 = arith.constant 0 : i32
    return %arg0, %c0_i32 : i32, i32
  }
  func.func @transform_3(%arg0: i32) -> (i32, i32) {
    %c0_i32 = arith.constant 0 : i32
    %c0_i32_0 = arith.constant 0 : i32
    return %arg0, %c0_i32 : i32, i32
  }
}

</mosaic_0001>

<llo_original>
// kernel: tpu_custom_call.1
$region0: #{tpu_custom_call.1}
  #allocation0 [shape = 'u32[]', space=smem, size = 0x4, offset = 0x4, fixed_abs, tag = 'smem constant byte address 0x4 - core index']
  #allocation1 [shape = 'u32[144,128]{1,0:T(1,128)}', space=vmem, size = 0x12000, scoped, tag = 'internal scratch']
  %s0 = inlined_call_operand.hbm [shape: f32[8,128], index: 0, kind: input, shape index: {}]
  %s1 = inlined_call_operand.vmem [shape: s32[8,128], index: 1, kind: output, shape index: {}]
  %s2 = sld [smem:[#allocation0]]
  $region18: #{tpu_custom_call.1} parent=0
    _
  %s4 = ssub.s32 1, %s2
  %s5 = scalar_select 0, %s4, %s2
  $region1: #{tpu_custom_call.1} parent=0
    #allocation2 [shape = 'u8[4096]{0}', space=vmem, size = 0x1000, scoped, tag = 'input window, operand 0, single buffered']
    #allocation3 [shape = 's32[1]{0}', space=sflag, size = 0x4, scoped, tag = 'scoped memory for tpu_custom_call.1']
    %6 = vsyncpa [#allocation3], 0
    // Predicated region
    $region2: #{tpu_custom_call.1} parent=1 // pred_check
      _
    $region3: #{tpu_custom_call.1} parent=1 // pred_check_branch
      %8 = sbr.rel (0) target = $region5
    $region4: #{tpu_custom_call.1} parent=1 // pred_region
      %s10 = ssub.s32 128, 128
      %11 = vsyncadd [#allocation3], %s10
      %s13 = sshll.u32 [#allocation2], 4
      %s14 = int_to_ptr.vmem [resolvable:$true] %s13
      %16 = dma.hbm_to_vmem [thread:$0]  %s0, 128, %s14, [#allocation3]
    $region5: #{tpu_custom_call.1} parent=1 // pred_fallthru
      _
    // Predicated region
    $region6: #{tpu_custom_call.1} parent=1 // pred_check
      _
    $region7: #{tpu_custom_call.1} parent=1 // pred_check_branch
      %18 = sbr.rel (0) target = $region9
    $region8: #{tpu_custom_call.1} parent=1 // pred_region
      %19 = dma.done [#allocation3], 128
    $region9: #{tpu_custom_call.1} parent=1 // pred_fallthru
      _
    %v20 = vld [vmem:[#allocation2] sm:$0xff]
    %vm21 = vcmp.eq.f32.partialorder %v20, 0.0
    %v22 = vsel %vm21, 1, 0
    %23 = vst [vmem:[%s1] sm:$0xff] %v22
    // Predicated region
    $region10: #{tpu_custom_call.1} parent=1 // pred_check
      _
    $region11: #{tpu_custom_call.1} parent=1 // pred_check_branch
      %25 = sbr.rel (0) target = $region13
    $region12: #{tpu_custom_call.1} parent=1 // pred_region
      _
    $region13: #{tpu_custom_call.1} parent=1 // pred_fallthru
      _
    // Predicated region
    $region14: #{tpu_custom_call.1} parent=1 // pred_check
      _
    $region15: #{tpu_custom_call.1} parent=1 // pred_check_branch
      %27 = sbr.rel (0) target = $region17
    $region16: #{tpu_custom_call.1} parent=1 // pred_region
      _
    $region17: #{tpu_custom_call.1} parent=1 // pred_fallthru
      _
    %28 = vsyncpa [#allocation3], 1

// kernel: _forward_impl.3
$region0: #{_forward_impl.3}
  #allocation0 [shape = 'u32[]', space=smem, size = 0x4, offset = 0x4, fixed_abs, tag = 'smem constant byte address 0x4 - core index']
  #allocation1 [shape = 'u32[144,128]{1,0:T(1,128)}', space=vmem, size = 0x12000, scoped, tag = 'internal scratch']
  %s0 = inlined_call_operand.vmem [shape: s32[4,1024], index: 0, kind: input, shape index: {}]
  %s1 = inlined_call_operand.vmem [shape: s8[4,1024], index: 1, kind: output, shape index: {}]
  %s2 = sld [smem:[#allocation0]]
  $region14: #{_forward_impl.3} parent=0
    _
  %s4 = ssub.s32 1, %s2
  %s5 = scalar_select 0, %s4, %s2
  // Predicated region
  $region2: #{_forward_impl.3} parent=0 // pred_check
    _
  $region3: #{_forward_impl.3} parent=0 // pred_check_branch
    %7 = sbr.rel (0) target = $region5
  $region4: #{_forward_impl.3} parent=0 // pred_region
    _
  $region5: #{_forward_impl.3} parent=0 // pred_fallthru
    _
  %v10 = vld [vmem:[%s0] sm:$0xff]
  %v11 = vld [vmem:[%s0 + $0x8] sm:$0xff]
  %v12 = vld [vmem:[%s0 + $0x10] sm:$0xff]
  %v13 = vld [vmem:[%s0 + $0x18] sm:$0xff]
  %vm14 = vcmp.eq.s32.totalorder %v10, 3
  %vm15 = vcmp.eq.s32.totalorder %v11, 3
  %vm16 = vcmp.eq.s32.totalorder %v12, 3
  %vm17 = vcmp.eq.s32.totalorder %v13, 3
  %v18 = vsel %vm14, 1, 0
  %v19 = vsel %vm15, 1, 0
  %v20 = vsel %vm16, 1, 0
  %v21 = vsel %vm17, 1, 0
  %v22 = vpack.c.b16 %v19, %v18
  %v23 = vpack.c.b16 %v21, %v20
  %v24 = vpack.c.b8 %v23, %v22
  %vm25 = vnez %v24
  %v26 = vsel %vm25, 16843009, 0
  %v27 = vcombine.high %v26, %v26
  %v29 = vunpack.c.l.s4 1966171168
  %v30 = vunpack.c.0.s8 %v29
  %v31 = vlaneseq
  %v32 = vshrl.u32 %v31, 7
  %v33 = vsub.s32 %v30, %v32
  %v34 = vrot.slane %v26, %v33
  %v36 = vunpack.c.l.s4 1966171168
  %v37 = vunpack.c.0.s8 %v36
  %v38 = vlaneseq
  %v39 = vshrl.u32 %v38, 7
  %v40 = vsub.s32 %v37, %v39
  %v41 = vrot.slane %v27, %v40
  %v42 = vcombine.high %v34, %v34
  %v43 = vcombine.high %v41, %v41
  %v45 = vunpack.c.l.s4 1966171168
  %v46 = vunpack.c.0.s8 %v45
  %v47 = vlaneseq
  %v48 = vshrl.u32 %v47, 7
  %v49 = vsub.s32 %v46, %v48
  %v50 = vrot.slane %v34, %v49
  %v52 = vunpack.c.l.s4 1966171168
  %v53 = vunpack.c.0.s8 %v52
  %v54 = vlaneseq
  %v55 = vshrl.u32 %v54, 7
  %v56 = vsub.s32 %v53, %v55
  %v57 = vrot.slane %v41, %v56
  %v59 = vunpack.c.l.s4 1966171168
  %v60 = vunpack.c.0.s8 %v59
  %v61 = vlaneseq
  %v62 = vshrl.u32 %v61, 7
  %v63 = vsub.s32 %v60, %v62
  %v64 = vrot.slane %v42, %v63
  %v66 = vunpack.c.l.s4 1966171168
  %v67 = vunpack.c.0.s8 %v66
  %v68 = vlaneseq
  %v69 = vshrl.u32 %v68, 7
  %v70 = vsub.s32 %v67, %v69
  %v71 = vrot.slane %v43, %v70
  %v72 = vcombine.high %v50, %v50
  %v73 = vcombine.high %v57, %v57
  %v74 = vcombine.high %v64, %v64
  %v75 = vcombine.high %v71, %v71
  %vm76 = vnez %v50
  %vm77 = vnez %v64
  %vm78 = vnez %v72
  %vm79 = vnez %v74
  %vm80 = vnez %v57
  %vm81 = vnez %v71
  %vm82 = vnez %v73
  %vm83 = vnez %v75
  %v84 = vsel %vm76, 16843009, 0
  %v85 = vsel %vm77, 16843009, 0
  %v86 = vsel %vm78, 16843009, 0
  %v87 = vsel %vm79, 16843009, 0
  %v88 = vsel %vm80, 16843009, 0
  %v89 = vsel %vm81, 16843009, 0
  %v90 = vsel %vm82, 16843009, 0
  %v91 = vsel %vm83, 16843009, 0
  %v92 = vcombine.low %v84, %v85
  %v93 = vcombine.low %v86, %v87
  %v94 = vcombine.low %v88, %v89
  %v95 = vcombine.low %v90, %v91
  %v97 = vunpack.c.l.s4 1966171168
  %v98 = vunpack.c.0.s8 %v97
  %v99 = vlaneseq
  %v100 = vshrl.u32 %v99, 7
  %v101 = vsub.s32 %v98, %v100
  %v102 = vrot.slane %v92, %v101
  %v104 = vunpack.c.l.s4 1966171168
  %v105 = vunpack.c.0.s8 %v104
  %v106 = vlaneseq
  %v107 = vshrl.u32 %v106, 7
  %v108 = vsub.s32 %v105, %v107
  %v109 = vrot.slane %v93, %v108
  %v111 = vunpack.c.l.s4 1966171168
  %v112 = vunpack.c.0.s8 %v111
  %v113 = vlaneseq
  %v114 = vshrl.u32 %v113, 7
  %v115 = vsub.s32 %v112, %v114
  %v116 = vrot.slane %v94, %v115
  %v118 = vunpack.c.l.s4 1966171168
  %v119 = vunpack.c.0.s8 %v118
  %v120 = vlaneseq
  %v121 = vshrl.u32 %v120, 7
  %v122 = vsub.s32 %v119, %v121
  %v123 = vrot.slane %v95, %v122
  %v124 = vcombine.low %v102, %v109
  %v125 = vcombine.low %v116, %v123
  %v127 = vunpack.c.l.s4 1966171168
  %v128 = vunpack.c.0.s8 %v127
  %v129 = vlaneseq
  %v130 = vshrl.u32 %v129, 7
  %v131 = vsub.s32 %v128, %v130
  %v132 = vrot.slane %v124, %v131
  %v134 = vunpack.c.l.s4 1966171168
  %v135 = vunpack.c.0.s8 %v134
  %v136 = vlaneseq
  %v137 = vshrl.u32 %v136, 7
  %v138 = vsub.s32 %v135, %v137
  %v139 = vrot.slane %v125, %v138
  %v140 = vcombine.low %v132, %v139
  %141 = vst [vmem:[%s1] sm:$0xff] %v140
  // Predicated region
  $region6: #{_forward_impl.3} parent=0 // pred_check
    _
  $region7: #{_forward_impl.3} parent=0 // pred_check_branch
    %143 = sbr.rel (0) target = $region9
  $region8: #{_forward_impl.3} parent=0 // pred_region
    _
  $region9: #{_forward_impl.3} parent=0 // pred_fallthru
    _
  // Predicated region
  $region10: #{_forward_impl.3} parent=0 // pred_check
    _
  $region11: #{_forward_impl.3} parent=0 // pred_check_branch
    %145 = sbr.rel (0) target = $region13
  $region12: #{_forward_impl.3} parent=0 // pred_region
    _
  $region13: #{_forward_impl.3} parent=0 // pred_fallthru
    _

// kernel: _forward_impl.2
$region0: #{_forward_impl.2}
  #allocation0 [shape = 'u32[]', space=smem, size = 0x4, offset = 0x4, fixed_abs, tag = 'smem constant byte address 0x4 - core index']
  #allocation1 [shape = 'u32[144,128]{1,0:T(1,128)}', space=vmem, size = 0x12000, scoped, tag = 'internal scratch']
  %s0 = inlined_call_operand.hbm [shape: f32[1,1024], index: 0, kind: input, shape index: {}]
  %s1 = inlined_call_operand.hbm [shape: f32[1,1024], index: 1, kind: input, shape index: {}]
  %s2 = inlined_call_operand.vmem [shape: s8[1,1024], index: 2, kind: output, shape index: {0}]
  %s3 = inlined_call_operand.vmem [shape: s8[1,1024], index: 3, kind: output, shape index: {1}]
  %4 = xla_tuple %s2, %s3
  %s5 = sld [smem:[#allocation0]]
  $region34: #{_forward_impl.2} parent=0
    _
  %s7 = ssub.s32 1, %s5
  %s8 = scalar_select 0, %s7, %s5
  $region1: #{_forward_impl.2} parent=0
    #allocation2 [shape = 'u8[4096]{0}', space=vmem, size = 0x1000, scoped, tag = 'input window, operand 0, single buffered']
    #allocation3 [shape = 's32[1]{0}', space=sflag, size = 0x4, scoped, tag = 'scoped memory for _forward_impl.2']
    #allocation4 [shape = 'u8[4096]{0}', space=vmem, size = 0x1000, scoped, tag = 'input window, operand 1, single buffered']
    #allocation5 [shape = 's32[1]{0}', space=sflag, size = 0x4, scoped, tag = 'scoped memory for _forward_impl.2']
    %9 = vsyncpa [#allocation3], 0
    %10 = vsyncpa [#allocation5], 0
    // Predicated region
    $region2: #{_forward_impl.2} parent=1 // pred_check
      _
    $region3: #{_forward_impl.2} parent=1 // pred_check_branch
      %12 = sbr.rel (0) target = $region5
    $region4: #{_forward_impl.2} parent=1 // pred_region
      %s14 = ssub.s32 128, 128
      %15 = vsyncadd [#allocation3], %s14
      %s17 = sshll.u32 [#allocation2], 4
      %s18 = int_to_ptr.vmem [resolvable:$true] %s17
      %20 = dma.hbm_to_vmem [thread:$0]  %s0, 128, %s18, [#allocation3]
    $region5: #{_forward_impl.2} parent=1 // pred_fallthru
      _
    // Predicated region
    $region6: #{_forward_impl.2} parent=1 // pred_check
      _
    $region7: #{_forward_impl.2} parent=1 // pred_check_branch
      %22 = sbr.rel (0) target = $region9
    $region8: #{_forward_impl.2} parent=1 // pred_region
      %s24 = ssub.s32 128, 128
      %25 = vsyncadd [#allocation5], %s24
      %s27 = sshll.u32 [#allocation4], 4
      %s28 = int_to_ptr.vmem [resolvable:$true] %s27
      %30 = dma.hbm_to_vmem [thread:$0]  %s1, 128, %s28, [#allocation5]
    $region9: #{_forward_impl.2} parent=1 // pred_fallthru
      _
    // Predicated region
    $region10: #{_forward_impl.2} parent=1 // pred_check
      _
    $region11: #{_forward_impl.2} parent=1 // pred_check_branch
      %32 = sbr.rel (0) target = $region13
    $region12: #{_forward_impl.2} parent=1 // pred_region
      %33 = dma.done [#allocation3], 128
    $region13: #{_forward_impl.2} parent=1 // pred_fallthru
      _
    // Predicated region
    $region14: #{_forward_impl.2} parent=1 // pred_check
      _
    $region15: #{_forward_impl.2} parent=1 // pred_check_branch
      %35 = sbr.rel (0) target = $region17
    $region16: #{_forward_impl.2} parent=1 // pred_region
      %36 = dma.done [#allocation5], 128
    $region17: #{_forward_impl.2} parent=1 // pred_fallthru
      _
    %v39 = vld [vmem:[#allocation2] sm:$0xff]
    %v40 = vld [vmem:[#allocation4] sm:$0xff]
    %vm41 = vcmp.eq.f32.partialorder %v39, %v40
    %v42 = vsel %vm41, 1, 0
    %v44 = vunpack.c.l.s4 286326784
    %v45 = vunpack.c.0.s8 %v44
    %v46 = vlaneseq
    %v47 = vshrl.u32 %v46, 7
    %v48 = vsub.s32 %v45, %v47
    %v49 = vrot.slane %v42, %v48
    %v51 = vunpack.c.l.s4 858989090
    %v52 = vunpack.c.0.s8 %v51
    %v53 = vlaneseq
    %v54 = vshrl.u32 %v53, 7
    %v55 = vsub.s32 %v52, %v54
    %v56 = vrot.slane %v42, %v55
    %v58 = vunpack.c.l.s4 1431651396
    %v59 = vunpack.c.0.s8 %v58
    %v60 = vlaneseq
    %v61 = vshrl.u32 %v60, 7
    %v62 = vsub.s32 %v59, %v61
    %v63 = vrot.slane %v42, %v62
    %v65 = vunpack.c.l.s4 2004313702
    %v66 = vunpack.c.0.s8 %v65
    %v67 = vlaneseq
    %v68 = vshrl.u32 %v67, 7
    %v69 = vsub.s32 %v66, %v68
    %v70 = vrot.slane %v42, %v69
    %vm71 = vcmp.ne.s32.totalorder %v49, 0
    %vm72 = vcmp.ne.s32.totalorder %v56, 0
    %vm73 = vcmp.ne.s32.totalorder %v63, 0
    %vm74 = vcmp.ne.s32.totalorder %v70, 0
    %v75 = vsel %vm71, 1, 0
    %v76 = vsel %vm72, 1, 0
    %v77 = vsel %vm73, 1, 0
    %v78 = vsel %vm74, 1, 0
    %v79 = vpack.c.b16 %v76, %v75
    %v80 = vpack.c.b16 %v78, %v77
    %v81 = vpack.c.b8 %v80, %v79
    %vm82 = vnez %v81
    %v83 = vsel %vm82, 16843009, 0
    %v84 = vcombine.high %v83, %v83
    %v86 = vunpack.c.l.s4 1966171168
    %v87 = vunpack.c.0.s8 %v86
    %v88 = vlaneseq
    %v89 = vshrl.u32 %v88, 7
    %v90 = vsub.s32 %v87, %v89
    %v91 = vrot.slane %v83, %v90
    %v93 = vunpack.c.l.s4 1966171168
    %v94 = vunpack.c.0.s8 %v93
    %v95 = vlaneseq
    %v96 = vshrl.u32 %v95, 7
    %v97 = vsub.s32 %v94, %v96
    %v98 = vrot.slane %v84, %v97
    %v99 = vcombine.high %v91, %v91
    %v100 = vcombine.high %v98, %v98
    %v102 = vunpack.c.l.s4 1966171168
    %v103 = vunpack.c.0.s8 %v102
    %v104 = vlaneseq
    %v105 = vshrl.u32 %v104, 7
    %v106 = vsub.s32 %v103, %v105
    %v107 = vrot.slane %v91, %v106
    %v109 = vunpack.c.l.s4 1966171168
    %v110 = vunpack.c.0.s8 %v109
    %v111 = vlaneseq
    %v112 = vshrl.u32 %v111, 7
    %v113 = vsub.s32 %v110, %v112
    %v114 = vrot.slane %v98, %v113
    %v116 = vunpack.c.l.s4 1966171168
    %v117 = vunpack.c.0.s8 %v116
    %v118 = vlaneseq
    %v119 = vshrl.u32 %v118, 7
    %v120 = vsub.s32 %v117, %v119
    %v121 = vrot.slane %v99, %v120
    %v123 = vunpack.c.l.s4 1966171168
    %v124 = vunpack.c.0.s8 %v123
    %v125 = vlaneseq
    %v126 = vshrl.u32 %v125, 7
    %v127 = vsub.s32 %v124, %v126
    %v128 = vrot.slane %v100, %v127
    %v129 = vcombine.high %v107, %v107
    %v130 = vcombine.high %v114, %v114
    %v131 = vcombine.high %v121, %v121
    %v132 = vcombine.high %v128, %v128
    %vm133 = vnez %v107
    %vm134 = vnez %v121
    %vm135 = vnez %v129
    %vm136 = vnez %v131
    %vm137 = vnez %v114
    %vm138 = vnez %v128
    %vm139 = vnez %v130
    %vm140 = vnez %v132
    %v141 = vsel %vm133, 16843009, 0
    %v142 = vsel %vm134, 16843009, 0
    %v143 = vsel %vm135, 16843009, 0
    %v144 = vsel %vm136, 16843009, 0
    %v145 = vsel %vm137, 16843009, 0
    %v146 = vsel %vm138, 16843009, 0
    %v147 = vsel %vm139, 16843009, 0
    %v148 = vsel %vm140, 16843009, 0
    %v149 = vcombine.low %v141, %v142
    %v150 = vcombine.low %v143, %v144
    %v151 = vcombine.low %v145, %v146
    %v152 = vcombine.low %v147, %v148
    %v154 = vunpack.c.l.s4 1966171168
    %v155 = vunpack.c.0.s8 %v154
    %v156 = vlaneseq
    %v157 = vshrl.u32 %v156, 7
    %v158 = vsub.s32 %v155, %v157
    %v159 = vrot.slane %v149, %v158
    %v161 = vunpack.c.l.s4 1966171168
    %v162 = vunpack.c.0.s8 %v161
    %v163 = vlaneseq
    %v164 = vshrl.u32 %v163, 7
    %v165 = vsub.s32 %v162, %v164
    %v166 = vrot.slane %v150, %v165
    %v168 = vunpack.c.l.s4 1966171168
    %v169 = vunpack.c.0.s8 %v168
    %v170 = vlaneseq
    %v171 = vshrl.u32 %v170, 7
    %v172 = vsub.s32 %v169, %v171
    %v173 = vrot.slane %v151, %v172
    %v175 = vunpack.c.l.s4 1966171168
    %v176 = vunpack.c.0.s8 %v175
    %v177 = vlaneseq
    %v178 = vshrl.u32 %v177, 7
    %v179 = vsub.s32 %v176, %v178
    %v180 = vrot.slane %v152, %v179
    %v181 = vcombine.low %v159, %v166
    %v182 = vcombine.low %v173, %v180
    %v184 = vunpack.c.l.s4 1966171168
    %v185 = vunpack.c.0.s8 %v184
    %v186 = vlaneseq
    %v187 = vshrl.u32 %v186, 7
    %v188 = vsub.s32 %v185, %v187
    %v189 = vrot.slane %v181, %v188
    %v191 = vunpack.c.l.s4 1966171168
    %v192 = vunpack.c.0.s8 %v191
    %v193 = vlaneseq
    %v194 = vshrl.u32 %v193, 7
    %v195 = vsub.s32 %v192, %v194
    %v196 = vrot.slane %v182, %v195
    %v197 = vcombine.low %v189, %v196
    %vm198 = vcmask 1040384
    %vm199 = vsmask.f32 0
    %vm200 = vmand %vm198, %vm199
    %vm201 = vcmask 1041409
    %vm202 = vsmask.f32 1024
    %vm203 = vmand %vm201, %vm202
    %vm204 = vmor %vm203, %vm200
    %vm205 = vcmask 1042434
    %vm206 = vsmask.f32 2048
    %vm207 = vmand %vm205, %vm206
    %vm208 = vmor %vm207, %vm204
    %vm209 = vcmask 1043459
    %vm210 = vsmask.f32 3072
    %vm211 = vmand %vm209, %vm210
    %vm212 = vmor %vm211, %vm208
    %vm213 = vcmask 1044484
    %vm214 = vsmask.f32 4096
    %vm215 = vmand %vm213, %vm214
    %vm216 = vmor %vm215, %vm212
    %vm217 = vcmask 1045509
    %vm218 = vsmask.f32 5120
    %vm219 = vmand %vm217, %vm218
    %vm220 = vmor %vm219, %vm216
    %vm221 = vcmask 1046534
    %vm222 = vsmask.f32 6144
    %vm223 = vmand %vm221, %vm222
    %vm224 = vmor %vm223, %vm220
    %vm225 = vcmask 1047559
    %vm226 = vsmask.f32 7168
    %vm227 = vmand %vm225, %vm226
    %vm228 = vmor %vm227, %vm224
    %v229 = vld [vmem:[%s2] sm:$0xff]
    %v230 = vsel %vm228, %v197, %v229
    %231 = vst [vmem:[%s2] sm:$0xff] %v230
    %vm232 = vcmp.eq.f32.partialorder %v40, %v40
    %v233 = vsel %vm232, 1, 0
    %v235 = vunpack.c.l.s4 286326784
    %v236 = vunpack.c.0.s8 %v235
    %v237 = vlaneseq
    %v238 = vshrl.u32 %v237, 7
    %v239 = vsub.s32 %v236, %v238
    %v240 = vrot.slane %v233, %v239
    %v242 = vunpack.c.l.s4 858989090
    %v243 = vunpack.c.0.s8 %v242
    %v244 = vlaneseq
    %v245 = vshrl.u32 %v244, 7
    %v246 = vsub.s32 %v243, %v245
    %v247 = vrot.slane %v233, %v246
    %v249 = vunpack.c.l.s4 1431651396
    %v250 = vunpack.c.0.s8 %v249
    %v251 = vlaneseq
    %v252 = vshrl.u32 %v251, 7
    %v253 = vsub.s32 %v250, %v252
    %v254 = vrot.slane %v233, %v253
    %v256 = vunpack.c.l.s4 2004313702
    %v257 = vunpack.c.0.s8 %v256
    %v258 = vlaneseq
    %v259 = vshrl.u32 %v258, 7
    %v260 = vsub.s32 %v257, %v259
    %v261 = vrot.slane %v233, %v260
    %vm262 = vcmp.ne.s32.totalorder %v240, 0
    %vm263 = vcmp.ne.s32.totalorder %v247, 0
    %vm264 = vcmp.ne.s32.totalorder %v254, 0
    %vm265 = vcmp.ne.s32.totalorder %v261, 0
    %v266 = vsel %vm262, 1, 0
    %v267 = vsel %vm263, 1, 0
    %v268 = vsel %vm264, 1, 0
    %v269 = vsel %vm265, 1, 0
    %v270 = vpack.c.b16 %v267, %v266
    %v271 = vpack.c.b16 %v269, %v268
    %v272 = vpack.c.b8 %v271, %v270
    %vm273 = vnez %v272
    %v274 = vsel %vm273, 16843009, 0
    %v275 = vcombine.high %v274, %v274
    %v277 = vunpack.c.l.s4 1966171168
    %v278 = vunpack.c.0.s8 %v277
    %v279 = vlaneseq
    %v280 = vshrl.u32 %v279, 7
    %v281 = vsub.s32 %v278, %v280
    %v282 = vrot.slane %v274, %v281
    %v284 = vunpack.c.l.s4 1966171168
    %v285 = vunpack.c.0.s8 %v284
    %v286 = vlaneseq
    %v287 = vshrl.u32 %v286, 7
    %v288 = vsub.s32 %v285, %v287
    %v289 = vrot.slane %v275, %v288
    %v290 = vcombine.high %v282, %v282
    %v291 = vcombine.high %v289, %v289
    %v293 = vunpack.c.l.s4 1966171168
    %v294 = vunpack.c.0.s8 %v293
    %v295 = vlaneseq
    %v296 = vshrl.u32 %v295, 7
    %v297 = vsub.s32 %v294, %v296
    %v298 = vrot.slane %v282, %v297
    %v300 = vunpack.c.l.s4 1966171168
    %v301 = vunpack.c.0.s8 %v300
    %v302 = vlaneseq
    %v303 = vshrl.u32 %v302, 7
    %v304 = vsub.s32 %v301, %v303
    %v305 = vrot.slane %v289, %v304
    %v307 = vunpack.c.l.s4 1966171168
    %v308 = vunpack.c.0.s8 %v307
    %v309 = vlaneseq
    %v310 = vshrl.u32 %v309, 7
    %v311 = vsub.s32 %v308, %v310
    %v312 = vrot.slane %v290, %v311
    %v314 = vunpack.c.l.s4 1966171168
    %v315 = vunpack.c.0.s8 %v314
    %v316 = vlaneseq
    %v317 = vshrl.u32 %v316, 7
    %v318 = vsub.s32 %v315, %v317
    %v319 = vrot.slane %v291, %v318
    %v320 = vcombine.high %v298, %v298
    %v321 = vcombine.high %v305, %v305
    %v322 = vcombine.high %v312, %v312
    %v323 = vcombine.high %v319, %v319
    %vm324 = vnez %v298
    %vm325 = vnez %v312
    %vm326 = vnez %v320
    %vm327 = vnez %v322
    %vm328 = vnez %v305
    %vm329 = vnez %v319
    %vm330 = vnez %v321
    %vm331 = vnez %v323
    %v332 = vsel %vm324, 16843009, 0
    %v333 = vsel %vm325, 16843009, 0
    %v334 = vsel %vm326, 16843009, 0
    %v335 = vsel %vm327, 16843009, 0
    %v336 = vsel %vm328, 16843009, 0
    %v337 = vsel %vm329, 16843009, 0
    %v338 = vsel %vm330, 16843009, 0
    %v339 = vsel %vm331, 16843009, 0
    %v340 = vcombine.low %v332, %v333
    %v341 = vcombine.low %v334, %v335
    %v342 = vcombine.low %v336, %v337
    %v343 = vcombine.low %v338, %v339
    %v345 = vunpack.c.l.s4 1966171168
    %v346 = vunpack.c.0.s8 %v345
    %v347 = vlaneseq
    %v348 = vshrl.u32 %v347, 7
    %v349 = vsub.s32 %v346, %v348
    %v350 = vrot.slane %v340, %v349
    %v352 = vunpack.c.l.s4 1966171168
    %v353 = vunpack.c.0.s8 %v352
    %v354 = vlaneseq
    %v355 = vshrl.u32 %v354, 7
    %v356 = vsub.s32 %v353, %v355
    %v357 = vrot.slane %v341, %v356
    %v359 = vunpack.c.l.s4 1966171168
    %v360 = vunpack.c.0.s8 %v359
    %v361 = vlaneseq
    %v362 = vshrl.u32 %v361, 7
    %v363 = vsub.s32 %v360, %v362
    %v364 = vrot.slane %v342, %v363
    %v366 = vunpack.c.l.s4 1966171168
    %v367 = vunpack.c.0.s8 %v366
    %v368 = vlaneseq
    %v369 = vshrl.u32 %v368, 7
    %v370 = vsub.s32 %v367, %v369
    %v371 = vrot.slane %v343, %v370
    %v372 = vcombine.low %v350, %v357
    %v373 = vcombine.low %v364, %v371
    %v375 = vunpack.c.l.s4 1966171168
    %v376 = vunpack.c.0.s8 %v375
    %v377 = vlaneseq
    %v378 = vshrl.u32 %v377, 7
    %v379 = vsub.s32 %v376, %v378
    %v380 = vrot.slane %v372, %v379
    %v382 = vunpack.c.l.s4 1966171168
    %v383 = vunpack.c.0.s8 %v382
    %v384 = vlaneseq
    %v385 = vshrl.u32 %v384, 7
    %v386 = vsub.s32 %v383, %v385
    %v387 = vrot.slane %v373, %v386
    %v388 = vcombine.low %v380, %v387
    %v389 = vld [vmem:[%s3] sm:$0xff]
    %v390 = vsel %vm228, %v388, %v389
    %391 = vst [vmem:[%s3] sm:$0xff] %v390
    // Predicated region
    $region18: #{_forward_impl.2} parent=1 // pred_check
      _
    $region19: #{_forward_impl.2} parent=1 // pred_check_branch
      %393 = sbr.rel (0) target = $region21
    $region20: #{_forward_impl.2} parent=1 // pred_region
      _
    $region21: #{_forward_impl.2} parent=1 // pred_fallthru
      _
    // Predicated region
    $region22: #{_forward_impl.2} parent=1 // pred_check
      _
    $region23: #{_forward_impl.2} parent=1 // pred_check_branch
      %395 = sbr.rel (0) target = $region25
    $region24: #{_forward_impl.2} parent=1 // pred_region
      _
    $region25: #{_forward_impl.2} parent=1 // pred_fallthru
      _
    // Predicated region
    $region26: #{_forward_impl.2} parent=1 // pred_check
      _
    $region27: #{_forward_impl.2} parent=1 // pred_check_branch
      %397 = sbr.rel (0) target = $region29
    $region28: #{_forward_impl.2} parent=1 // pred_region
      _
    $region29: #{_forward_impl.2} parent=1 // pred_fallthru
      _
    // Predicated region
    $region30: #{_forward_impl.2} parent=1 // pred_check
      _
    $region31: #{_forward_impl.2} parent=1 // pred_check_branch
      %399 = sbr.rel (0) target = $region33
    $region32: #{_forward_impl.2} parent=1 // pred_region
      _
    $region33: #{_forward_impl.2} parent=1 // pred_fallthru
      _
    %400 = vsyncpa [#allocation3], 1
    %401 = vsyncpa [#allocation5], 1

</llo_original>
